<compile_context>
chip_gen: v7x
topology: tpu7x:2x2x1
jax: 0.10.0
libtpu: 0.0.40
codegen_flags: <defaults>
</compile_context>

<pallas_src>
import functools

import jax
import jax.numpy as jnp
from jax.experimental import pallas as pl
from jax.experimental.pallas import tpu as pltpu


def _round_up(x, m):
    return ((x + m - 1) // m) * m


def _vmem_capacity_bytes():
    """Best-effort per-core VMEM capacity query; conservative fallback (v7x = 64 MiB)."""
    try:
        return int(pltpu.get_tpu_info().vmem_capacity_bytes)
    except Exception:
        return 64 * 1024 * 1024


def _pick_row_tile(m, tm_req, row_bytes, vmem_budget):
    """Row tile: multiple of 8, fits the VMEM budget, and (when the problem allows)
    gives >= 8 grid steps with an even count so the single 'parallel' grid axis
    load-balances across v7x's two TensorCores and keeps the DMA pipeline full."""
    m8 = _round_up(max(m, 1), 8)
    tm = max(8, min(_round_up(tm_req, 8), m8))
    # Fit the per-tile VMEM budget (double-buffered in/out tiles + f32 accumulator).
    while tm > 8 and tm * row_bytes > vmem_budget:
        tm = max(8, _round_up(tm // 2, 8))
    # Prefer >= 8 grid steps (pipeline depth + 2-core sharding).
    while tm > 8 and pl.cdiv(m8, tm) < 8:
        tm = max(8, _round_up(tm // 2, 8))
    # Nudge toward an even step count (bounded search).
    t = tm
    for _ in range(16):
        if t <= 8 or pl.cdiv(m8, t) % 2 == 0:
            return t
        t -= 8
    return tm


def _dense_block_kernel(x_ref, wx_ref, wy_ref, b_ref, o_ref, acc_ref, *,
                        c0, c0_pad, growth, num_layers, lg, lg_pad, compute_dtype):
    """Fully fused DenseBlock tile (wide-N restructure).

    x_ref  : (tm, c0_pad)              lane-padded input tile (channels-last)
    wx_ref : (c0_pad, lg_pad)          x's contribution to every layer's pre-activation
    wy_ref : (max(L-1,1), g, lg_pad)   y_j's contribution to later layers (cols < (j+1)*g
                                       and cols >= lg are zero)
    b_ref  : (1, lg_pad)               concatenated biases (f32)
    o_ref  : (tm, c_pad)               output slab [x | y_0 .. y_{L-1} | pad], c_pad % 128 == 0
    acc_ref: (tm, lg_pad) f32 scratch  pre-activation accumulator for all new channels
    """
    g = growth

    # One wide-N MXU dot: x's contribution to every layer at once.
    acc_ref[...] = jnp.dot(x_ref[...], wx_ref[...],
                           preferred_element_type=jnp.float32)

    # Statically unrolled layer recurrence.  Layer j's activation is finalized in
    # registers (no narrow store) and immediately pushed into all *future* layers'
    # pre-activations with one wide accumulated dot.  The accumulator store starts
    # at a 128-lane-aligned column; the extra leading columns multiply zero weight
    # columns, so adding them is an exact no-op.
    for j in range(num_layers - 1):
        y = jnp.maximum(acc_ref[:, j * g:(j + 1) * g] + b_ref[:, j * g:(j + 1) * g], 0.0)
        y = y.astype(compute_dtype)
        start = ((j + 1) * g // 128) * 128           # static, 128-aligned
        wy = wy_ref[j][:, start:lg_pad]              # (g, lg_pad - start)
        acc_ref[:, start:lg_pad] += jnp.dot(y, wy, preferred_element_type=jnp.float32)

    # Epilogue: full-lane x copy (its pad columns are either overwritten by the y
    # store or fall in the stripped output padding), then ONE wide bias+ReLU store
    # of all new channels.  No per-layer masked stores, no slab zero-init.
    o_ref[:, :c0_pad] = x_ref[...].astype(o_ref.dtype)
    o_ref[:, c0:c0 + lg] = jnp.maximum(
        acc_ref[:, :lg] + b_ref[:, :lg], 0.0).astype(o_ref.dtype)


def dense_block_forward(x_nchw, params, *, tm=1024, compute_dtype=None):
    """DenseBlock forward (each layer = 1x1 conv + ReLU), fused in one pallas_call.

    Equivalent to: for l in layers: x = concat([x, relu(conv1x1_l(x))], dim=1).
    `compute_dtype=jnp.bfloat16` is recommended on v6e/v7x (halves HBM/VMEM traffic;
    accumulation and the bias+ReLU epilogue stay in f32), at the cost of quantizing
    intermediate layer activations.
    """
    if not params:
        return x_nchw

    n, c0, h, w = x_nchw.shape
    num_layers = len(params)
    growth = params[0][0].shape[1]
    # TODO(synk): the generic DenseBlock accepts arbitrary sub-layers; this fused
    # kernel covers the DenseNet-style case (1x1 conv + ReLU, uniform growth).
    assert all(p[0].shape[1] == growth for p in params), "uniform growth assumed"

    lg = growth * num_layers                 # new channels produced by the block
    c_total = c0 + lg
    c0_pad = _round_up(c0, 128)              # lane-dense input slab
    lg_pad = _round_up(lg, 128)              # lane-dense accumulator / weight N dim
    c_pad = _round_up(c_total, 128)          # lane-dense output slab
    m = n * h * w

    dtype = jnp.dtype(compute_dtype) if compute_dtype is not None else jnp.dtype(x_nchw.dtype)
    dt_size = dtype.itemsize

    # --- Generation-aware VMEM budgeting & row-tile choice -------------------
    cap = _vmem_capacity_bytes()                          # 128 MiB v5e/v6e, 64 MiB v7x
    vmem_limit = int(min(max((cap * 3) // 4, 32 << 20), 112 << 20))
    n_wy = max(1, num_layers - 1)
    w_resident = (2 * (c0_pad * lg_pad + n_wy * _round_up(growth, 8) * lg_pad) * dt_size
                  + 2 * 8 * lg_pad * 4)                   # double-buffered weights + bias
    row_bytes = 2 * c_pad * dt_size + 2 * c0_pad * dt_size + lg_pad * 4
    tile_budget = max(vmem_limit - w_resident - (2 << 20), 1 << 20)
    tm_eff = _pick_row_tile(m, tm, row_bytes, tile_budget)
    m_pad = pl.cdiv(m, tm_eff) * tm_eff

    # --- Host-side layout: NCHW -> channels-last ONCE, lane-padded ------------
    x2d = jnp.transpose(x_nchw, (0, 2, 3, 1)).reshape(m, c0).astype(dtype)
    if m_pad != m or c0_pad != c0:
        x2d = jnp.pad(x2d, ((0, m_pad - m), (0, c0_pad - c0)))

    # Pack all layer weights once, wide-N / lane-dense, so they stay VMEM-resident:
    #   wx[:c0, l*g:(l+1)*g]    = rows of W_l that multiply x           (c0 x g)
    #   wy[j, :, l*g:(l+1)*g]   = rows of W_l that multiply y_j, l > j  (g  x g)
    wx = jnp.zeros((c0_pad, lg_pad), dtype=dtype)
    wy = jnp.zeros((n_wy, growth, lg_pad), dtype=dtype)
    bb = jnp.zeros((1, lg_pad), dtype=jnp.float32)
    for l, (wl, bl) in enumerate(params):
        assert wl.shape == (c0 + l * growth, growth), "dense connectivity: C_in grows by growth"
        wx = wx.at[:c0, l * growth:(l + 1) * growth].set(wl[:c0].astype(dtype))
        bb = bb.at[0, l * growth:(l + 1) * growth].set(bl.astype(jnp.float32))
        for j in range(l):
            blk = wl[c0 + j * growth:c0 + (j + 1) * growth]
            wy = wy.at[j, :, l * growth:(l + 1) * growth].set(blk.astype(dtype))

    kernel = functools.partial(
        _dense_block_kernel, c0=c0, c0_pad=c0_pad, growth=growth,
        num_layers=num_layers, lg=lg, lg_pad=lg_pad, compute_dtype=dtype)

    out2d = pl.pallas_call(
        kernel,
        out_shape=jax.ShapeDtypeStruct((m_pad, c_pad), dtype),
        grid_spec=pltpu.PrefetchScalarGridSpec(
            num_scalar_prefetch=0,
            grid=(m_pad // tm_eff,),
            in_specs=[
                pl.BlockSpec((tm_eff, c0_pad), lambda i: (i, 0)),           # activations
                pl.BlockSpec((c0_pad, lg_pad), lambda i: (0, 0)),           # wx (VMEM-resident)
                pl.BlockSpec((n_wy, growth, lg_pad), lambda i: (0, 0, 0)),  # wy (VMEM-resident)
                pl.BlockSpec((1, lg_pad), lambda i: (0, 0)),                # biases
            ],
            out_specs=pl.BlockSpec((tm_eff, c_pad), lambda i: (i, 0)),
            scratch_shapes=[pltpu.VMEM((tm_eff, lg_pad), jnp.float32)],
        ),
        compiler_params=pltpu.CompilerParams(
            dimension_semantics=("parallel",),
            vmem_limit_bytes=vmem_limit,
        ),
    )(x2d, wx, wy, bb)

    # Strip padding; channels-last -> NCHW ONCE at block exit.
    out = out2d[:m, :c_total].reshape(n, h, w, c_total).transpose(0, 3, 1, 2)
    return out.astype(x_nchw.dtype)


def dense_block_reference(x_nchw, params):
    """Pure-JAX reference for correctness checking (matches the PyTorch module)."""
    x = x_nchw
    n, _, h, w = x.shape
    for (wl, bl) in params:
        c_in = x.shape[1]
        x2d = jnp.transpose(x, (0, 2, 3, 1)).reshape(n * h * w, c_in)
        y2d = jnp.maximum(x2d @ wl + bl.reshape(1, -1), 0.0)
        y = y2d.reshape(n, h, w, wl.shape[1]).transpose(0, 3, 1, 2)
        x = jnp.concatenate([x, y], axis=1)
    return x


def init_params(key, in_channels, growth, num_layers):
    """Deterministic synthetic weights for `num_layers` 1x1-conv+ReLU layers."""
    params = []
    c = in_channels
    for _ in range(num_layers):
        kw, kb, key = jax.random.split(key, 3)
        wl = jax.random.normal(kw, (c, growth), dtype=jnp.float32) * 0.1
        bl = jax.random.normal(kb, (growth,), dtype=jnp.float32) * 0.01
        params.append((wl, bl))
        c += growth  # dense connectivity: next layer sees concatenated channels
    return params


if __name__ == "__main__":
    key = jax.random.PRNGKey(0)
    kx, kp = jax.random.split(key)

    N, C, H, W = 2, 4, 16, 16
    growth, num_layers = 4, 3

    x = jax.random.normal(kx, (N, C, H, W), dtype=jnp.float32)
    params = init_params(kp, C, growth, num_layers)

    ref = dense_block_reference(x, params)

    # f32 path (matches reference to tight tolerance)
    out = jax.block_until_ready(dense_block_forward(x, params))
    assert out.shape == (N, C + growth * num_layers, H, W), out.shape
    assert jnp.allclose(out, ref, atol=1e-5, rtol=1e-5), "f32 mismatch vs reference"

    # bf16 compute path (recommended on v6e/v7x; intermediate activations are
    # quantized to bf16, so compare with loose tolerance)
    out_bf16 = jax.block_until_ready(
        dense_block_forward(x, params, compute_dtype=jnp.bfloat16))
    assert out_bf16.shape == out.shape
    assert jnp.allclose(out_bf16, ref, atol=1e-1, rtol=1e-1), "bf16 mismatch vs reference"

    print("KERNEL_OK")
</pallas_src>

<mosaic_0001>
module attributes {stable_mosaic.version = 11 : i64} {
  func.func @_dense_block_kernel(%arg0: i32, %arg1: memref<64x128xf32, #tpu.memory_space<vmem>>, %arg2: memref<128x128xf32, #tpu.memory_space<vmem>>, %arg3: memref<2x4x128xf32, #tpu.memory_space<vmem>>, %arg4: memref<1x128xf32, #tpu.memory_space<vmem>>, %arg5: memref<64x128xf32, #tpu.memory_space<vmem>>, %arg6: memref<64x128xf32, #tpu.memory_space<vmem>>) attributes {dimension_semantics = [#tpu.dimension_semantics<parallel>], iteration_bounds = array<i64: 8>, scalar_prefetch = 0 : i64, scratch_operands = 1 : i64, tpu.core_type = #tpu.core_type<tc>, window_params = [{transform_indices = @transform_0, window_bounds = array<i64: 64, 128>}, {pipeline_mode = #tpu.pipeline_mode<synchronous>, transform_indices = @transform_1, window_bounds = array<i64: 128, 128>}, {pipeline_mode = #tpu.pipeline_mode<synchronous>, transform_indices = @transform_2, window_bounds = array<i64: 2, 4, 128>}, {pipeline_mode = #tpu.pipeline_mode<synchronous>, transform_indices = @transform_3, window_bounds = array<i64: 1, 128>}, {transform_indices = @transform_4, window_bounds = array<i64: 64, 128>}]} {
    %c0 = arith.constant 0 : index
    %c0_0 = arith.constant 0 : index
    %0 = vector.load %arg1[%c0, %c0_0] : memref<64x128xf32, #tpu.memory_space<vmem>>, vector<64x128xf32>
    %c0_1 = arith.constant 0 : index
    %c0_2 = arith.constant 0 : index
    %1 = vector.load %arg2[%c0_1, %c0_2] : memref<128x128xf32, #tpu.memory_space<vmem>>, vector<128x128xf32>
    %cst = arith.constant dense<0.000000e+00> : vector<64x128xf32>
    %2 = tpu.matmul %0, %1, %cst {dimension_numbers = #tpu.dot_dimension_numbers<[1], [0], [0], [1], [0, 0, 1, 1], [], []>} : vector<64x128xf32>, vector<128x128xf32>, vector<64x128xf32> -> vector<64x128xf32>
    %c0_3 = arith.constant 0 : index
    %c0_4 = arith.constant 0 : index
    %3 = vector.load %arg6[%c0_3, %c0_4] : memref<64x128xf32, #tpu.memory_space<vmem>>, vector<64x128xf32>
    tpu.vector_store %arg6[%c0_3, %c0_4], %2 {strides = array<i32>} : memref<64x128xf32, #tpu.memory_space<vmem>>, vector<64x128xf32>,
    %c0_5 = arith.constant 0 : index
    %c0_6 = arith.constant 0 : index
    %4 = vector.load %arg6[%c0_5, %c0_6] : memref<64x128xf32, #tpu.memory_space<vmem>>, vector<64x4xf32>
    %c0_7 = arith.constant 0 : index
    %c0_8 = arith.constant 0 : index
    %5 = vector.load %arg4[%c0_7, %c0_8] : memref<1x128xf32, #tpu.memory_space<vmem>>, vector<1x4xf32>
    %6 = vector.broadcast %5 : vector<1x4xf32> to vector<64x4xf32>
    %7 = arith.addf %4, %6 : vector<64x4xf32>
    %cst_9 = arith.constant 0.000000e+00 : f32
    %8 = vector.broadcast %cst_9 : f32 to vector<64x4xf32>
    %9 = arith.maximumf %7, %8 : vector<64x4xf32>
    %c0_10 = arith.constant 0 : index
    %c0_11 = arith.constant 0 : index
    %c0_12 = arith.constant 0 : index
    %10 = vector.load %arg3[%c0_10, %c0_11, %c0_12] : memref<2x4x128xf32, #tpu.memory_space<vmem>>, vector<1x4x128xf32>
    %11 = vector.shape_cast %10 : vector<1x4x128xf32> to vector<4x128xf32>
    %c0_13 = arith.constant 0 : index
    %c0_14 = arith.constant 0 : index
    %12 = vector.load %arg6[%c0_13, %c0_14] : memref<64x128xf32, #tpu.memory_space<vmem>>, vector<64x128xf32>
    %cst_15 = arith.constant dense<0.000000e+00> : vector<64x128xf32>
    %13 = tpu.matmul %9, %11, %cst_15 {dimension_numbers = #tpu.dot_dimension_numbers<[1], [0], [0], [1], [0, 0, 1, 1], [], []>} : vector<64x4xf32>, vector<4x128xf32>, vector<64x128xf32> -> vector<64x128xf32>
    %14 = arith.addf %12, %13 : vector<64x128xf32>
    %c0_16 = arith.constant 0 : index
    %c0_17 = arith.constant 0 : index
    %15 = vector.load %arg6[%c0_16, %c0_17] : memref<64x128xf32, #tpu.memory_space<vmem>>, vector<64x128xf32>
    tpu.vector_store %arg6[%c0_16, %c0_17], %14 {strides = array<i32>} : memref<64x128xf32, #tpu.memory_space<vmem>>, vector<64x128xf32>,
    %c0_18 = arith.constant 0 : index
    %c4 = arith.constant 4 : index
    %16 = vector.load %arg6[%c0_18, %c4] : memref<64x128xf32, #tpu.memory_space<vmem>>, vector<64x4xf32>
    %c0_19 = arith.constant 0 : index
    %c4_20 = arith.constant 4 : index
    %17 = vector.load %arg4[%c0_19, %c4_20] : memref<1x128xf32, #tpu.memory_space<vmem>>, vector<1x4xf32>
    %18 = vector.broadcast %17 : vector<1x4xf32> to vector<64x4xf32>
    %19 = arith.addf %16, %18 : vector<64x4xf32>
    %cst_21 = arith.constant 0.000000e+00 : f32
    %20 = vector.broadcast %cst_21 : f32 to vector<64x4xf32>
    %21 = arith.maximumf %19, %20 : vector<64x4xf32>
    %c1 = arith.constant 1 : index
    %c0_22 = arith.constant 0 : index
    %c0_23 = arith.constant 0 : index
    %22 = vector.load %arg3[%c1, %c0_22, %c0_23] : memref<2x4x128xf32, #tpu.memory_space<vmem>>, vector<1x4x128xf32>
    %23 = vector.shape_cast %22 : vector<1x4x128xf32> to vector<4x128xf32>
    %c0_24 = arith.constant 0 : index
    %c0_25 = arith.constant 0 : index
    %24 = vector.load %arg6[%c0_24, %c0_25] : memref<64x128xf32, #tpu.memory_space<vmem>>, vector<64x128xf32>
    %cst_26 = arith.constant dense<0.000000e+00> : vector<64x128xf32>
    %25 = tpu.matmul %21, %23, %cst_26 {dimension_numbers = #tpu.dot_dimension_numbers<[1], [0], [0], [1], [0, 0, 1, 1], [], []>} : vector<64x4xf32>, vector<4x128xf32>, vector<64x128xf32> -> vector<64x128xf32>
    %26 = arith.addf %24, %25 : vector<64x128xf32>
    %c0_27 = arith.constant 0 : index
    %c0_28 = arith.constant 0 : index
    %27 = vector.load %arg6[%c0_27, %c0_28] : memref<64x128xf32, #tpu.memory_space<vmem>>, vector<64x128xf32>
    tpu.vector_store %arg6[%c0_27, %c0_28], %26 {strides = array<i32>} : memref<64x128xf32, #tpu.memory_space<vmem>>, vector<64x128xf32>,
    %c0_29 = arith.constant 0 : index
    %c0_30 = arith.constant 0 : index
    %28 = vector.load %arg1[%c0_29, %c0_30] : memref<64x128xf32, #tpu.memory_space<vmem>>, vector<64x128xf32>
    %c0_31 = arith.constant 0 : index
    %c0_32 = arith.constant 0 : index
    %29 = vector.load %arg5[%c0_31, %c0_32] : memref<64x128xf32, #tpu.memory_space<vmem>>, vector<64x128xf32>
    tpu.vector_store %arg5[%c0_31, %c0_32], %28 {strides = array<i32>} : memref<64x128xf32, #tpu.memory_space<vmem>>, vector<64x128xf32>,
    %c0_33 = arith.constant 0 : index
    %c0_34 = arith.constant 0 : index
    %30 = vector.load %arg6[%c0_33, %c0_34] : memref<64x128xf32, #tpu.memory_space<vmem>>, vector<64x12xf32>
    %c0_35 = arith.constant 0 : index
    %c0_36 = arith.constant 0 : index
    %31 = vector.load %arg4[%c0_35, %c0_36] : memref<1x128xf32, #tpu.memory_space<vmem>>, vector<1x12xf32>
    %32 = vector.broadcast %31 : vector<1x12xf32> to vector<64x12xf32>
    %33 = arith.addf %30, %32 : vector<64x12xf32>
    %cst_37 = arith.constant 0.000000e+00 : f32
    %34 = vector.broadcast %cst_37 : f32 to vector<64x12xf32>
    %35 = arith.maximumf %33, %34 : vector<64x12xf32>
    %c0_38 = arith.constant 0 : index
    %c4_39 = arith.constant 4 : index
    %36 = vector.load %arg5[%c0_38, %c4_39] : memref<64x128xf32, #tpu.memory_space<vmem>>, vector<64x12xf32>
    tpu.vector_store %arg5[%c0_38, %c4_39], %35 {strides = array<i32>} : memref<64x128xf32, #tpu.memory_space<vmem>>, vector<64x12xf32>,
    return
  }
  func.func @transform_0(%arg0: i32) -> (i32, i32) {
    %c0_i32 = arith.constant 0 : i32
    %c0_i32_0 = arith.constant 0 : i32
    return %arg0, %c0_i32 : i32, i32
  }
  func.func @transform_1(%arg0: i32) -> (i32, i32) {
    %c0_i32 = arith.constant 0 : i32
    %c0_i32_0 = arith.constant 0 : i32
    %c0_i32_1 = arith.constant 0 : i32
    return %c0_i32, %c0_i32_0 : i32, i32
  }
  func.func @transform_2(%arg0: i32) -> (i32, i32, i32) {
    %c0_i32 = arith.constant 0 : i32
    %c0_i32_0 = arith.constant 0 : i32
    %c0_i32_1 = arith.constant 0 : i32
    %c0_i32_2 = arith.constant 0 : i32
    return %c0_i32, %c0_i32_0, %c0_i32_1 : i32, i32, i32
  }
  func.func @transform_3(%arg0: i32) -> (i32, i32) {
    %c0_i32 = arith.constant 0 : i32
    %c0_i32_0 = arith.constant 0 : i32
    %c0_i32_1 = arith.constant 0 : i32
    return %c0_i32, %c0_i32_0 : i32, i32
  }
  func.func @transform_4(%arg0: i32) -> (i32, i32) {
    %c0_i32 = arith.constant 0 : i32
    %c0_i32_0 = arith.constant 0 : i32
    return %arg0, %c0_i32 : i32, i32
  }
}

</mosaic_0001>

<llo_original>
// kernel: tpu_custom_call.1
$region0: #{tpu_custom_call.1}
  #allocation0 [shape = 'u32[]', space=smem, size = 0x4, offset = 0x4, fixed_abs, tag = 'smem constant byte address 0x4 - core index']
  #allocation1 [shape = 'u32[144,128]{1,0:T(1,128)}', space=vmem, size = 0x12000, scoped, tag = 'internal scratch']
  #allocation2 [shape = 'f32[64,128]{1,0:T(8,128)}', space=vmem, size = 0x8000, scoped, tag = 'scratch operand']
  %s0 = inlined_call_operand.hbm [shape: f32[512,128], index: 0, kind: input, shape index: {}]
  %s1 = inlined_call_operand.hbm [shape: f32[128,128], index: 1, kind: input, shape index: {}]
  %s2 = inlined_call_operand.hbm [shape: f32[2,4,128], index: 2, kind: input, shape index: {}]
  %s3 = inlined_call_operand.vmem [shape: f32[1,128], index: 3, kind: input, shape index: {}]
  %s4 = inlined_call_operand.hbm [shape: f32[512,128], index: 4, kind: output, shape index: {}]
  %s5 = sld [smem:[#allocation0]]
  $region61: #{tpu_custom_call.1} parent=0
    _
  %s7 = ssub.s32 1, %s5
  %s8 = scalar_select 0, %s7, %s5
  $region1: #{tpu_custom_call.1} parent=0
    #allocation3 [shape = 'u8[65536]{0}', space=vmem, size = 0x10000, scoped, tag = 'input window, operand 0']
    #allocation4 [shape = 's32[2]{0}', space=sflag, size = 0x8, scoped, tag = 'scoped memory for tpu_custom_call.1']
    #allocation5 [shape = 's32[2]{0}', space=sflag, size = 0x8, scoped, tag = 'scoped memory for tpu_custom_call.1']
    #allocation6 [shape = 'u8[65536]{0}', space=vmem, size = 0x10000, scoped, tag = 'input window, operand 1, single buffered']
    #allocation7 [shape = 's32[1]{0}', space=sflag, size = 0x4, scoped, tag = 'scoped memory for tpu_custom_call.1']
    #allocation8 [shape = 'u8[4096]{0}', space=vmem, size = 0x1000, scoped, tag = 'input window, operand 2, single buffered']
    #allocation9 [shape = 'u8[65536]{0}', space=vmem, size = 0x10000, scoped, tag = 'output window, operand 0']
    %9 = vsyncpa [#allocation4], 0
    %s10 = scalar_lea.sflag [#allocation4], 1
    %11 = vsyncpa %s10, 0
    %12 = vsyncpa [#allocation7], 0
    %13 = vsyncpa [#allocation5], 0
    %s14 = scalar_lea.sflag [#allocation5], 1
    %15 = vsyncpa %s14, 0
    loop: start=0, step=1, limit=10
    $region2: #{tpu_custom_call.1} parent=1 // loop_pre_header
      _
    $region3: #{tpu_custom_call.1} parent=1 // loop_header
      %s17 = sphi 0, %s21
      %p18 = scmp.ge.s32.totalorder %s17, 10
      %s27 = sphi 0, %s29
      %s30 = sphi 0, %s27
      %s31 = sphi 0, %s30
      %s47 = sphi 0, %s31
      %s51 = sphi 0, %s51
      %s53 = sphi 0, %s51
      %s54 = sphi 0, %s53
      %s68 = sphi 0, %s54
      %s72 = sphi 0, %s72
      %s74 = sphi 0, %s72
      %s75 = sphi 0, %s74
      %s89 = sphi 0, %s75
      %s93 = sphi 0, %s93
      %s95 = sphi 0, %s93
      %s96 = sphi 0, %s95
      %s110 = sphi 0, %s96
      %s116 = sphi 0, %s118
      %s119 = sphi 0, %s116
      %s120 = sphi 0, %s119
      %s136 = sphi 0, %s120
    $region4: #{tpu_custom_call.1} parent=1 // loop_header_branch
      %20 = sbr.rel (%p18) target = $region8
    $region5: #{tpu_custom_call.1} parent=1 // loop_body
      %s22 = ssub.s32 %s17, 1
      %s23 = ssub.s32 %s17, 2
      %s24 = sadd.s32 %s17, 1
      %s25 = ssub.s32 %s17, %s24
      %p26 = scmp.eq.s32.totalorder %s25, 0
      %s28 = sadd.s32 %s27, 1
      %s29 = scalar_select %p26, %s27, %s28
      %p32 = pneg %p26
      %p33 = scmp.eq.s32.totalorder %s17, 7
      %p34 = por %p32, %p33
      %p35 = scmp.ne.s32.totalorder %s27, %s30
      %p36 = scmp.eq.s32.totalorder %s17, 0
      %p37 = por %p35, %p36
      %p38 = scmp.ne.s32.totalorder %s27, %s30
      %p39 = scmp.eq.s32.totalorder %s22, 7
      %p40 = por %p38, %p39
      %p41 = scmp.ne.s32.totalorder %s30, %s31
      %p42 = scmp.eq.s32.totalorder %s22, 0
      %p43 = por %p41, %p42
      %p44 = scmp.ne.s32.totalorder %s30, %s31
      %p45 = scmp.eq.s32.totalorder %s23, 7
      %p46 = por %p44, %p45
      %p48 = scmp.ne.s32.totalorder %s31, %s47
      %p49 = scmp.eq.s32.totalorder %s23, 0
      %p50 = por %p48, %p49
      %s52 = sadd.s32 %s51, 1
      %p55 = scmp.eq.s32.totalorder %s17, 7
      %p56 = scmp.ne.s32.totalorder %s51, %s53
      %p57 = scmp.eq.s32.totalorder %s17, 0
      %p58 = por %p56, %p57
      %p59 = scmp.ne.s32.totalorder %s51, %s53
      %p60 = scmp.eq.s32.totalorder %s22, 7
      %p61 = por %p59, %p60
      %p62 = scmp.ne.s32.totalorder %s53, %s54
      %p63 = scmp.eq.s32.totalorder %s22, 0
      %p64 = por %p62, %p63
      %p65 = scmp.ne.s32.totalorder %s53, %s54
      %p66 = scmp.eq.s32.totalorder %s23, 7
      %p67 = por %p65, %p66
      %p69 = scmp.ne.s32.totalorder %s54, %s68
      %p70 = scmp.eq.s32.totalorder %s23, 0
      %p71 = por %p69, %p70
      %s73 = sadd.s32 %s72, 1
      %p76 = scmp.eq.s32.totalorder %s17, 7
      %p77 = scmp.ne.s32.totalorder %s72, %s74
      %p78 = scmp.eq.s32.totalorder %s17, 0
      %p79 = por %p77, %p78
      %p80 = scmp.ne.s32.totalorder %s72, %s74
      %p81 = scmp.eq.s32.totalorder %s22, 7
      %p82 = por %p80, %p81
      %p83 = scmp.ne.s32.totalorder %s74, %s75
      %p84 = scmp.eq.s32.totalorder %s22, 0
      %p85 = por %p83, %p84
      %p86 = scmp.ne.s32.totalorder %s74, %s75
      %p87 = scmp.eq.s32.totalorder %s23, 7
      %p88 = por %p86, %p87
      %p90 = scmp.ne.s32.totalorder %s75, %s89
      %p91 = scmp.eq.s32.totalorder %s23, 0
      %p92 = por %p90, %p91
      %s94 = sadd.s32 %s93, 1
      %p97 = scmp.eq.s32.totalorder %s17, 7
      %p98 = scmp.ne.s32.totalorder %s93, %s95
      %p99 = scmp.eq.s32.totalorder %s17, 0
      %p100 = por %p98, %p99
      %p101 = scmp.ne.s32.totalorder %s93, %s95
      %p102 = scmp.eq.s32.totalorder %s22, 7
      %p103 = por %p101, %p102
      %p104 = scmp.ne.s32.totalorder %s95, %s96
      %p105 = scmp.eq.s32.totalorder %s22, 0
      %p106 = por %p104, %p105
      %p107 = scmp.ne.s32.totalorder %s95, %s96
      %p108 = scmp.eq.s32.totalorder %s23, 7
      %p109 = por %p107, %p108
      %p111 = scmp.ne.s32.totalorder %s96, %s110
      %p112 = scmp.eq.s32.totalorder %s23, 0
      %p113 = por %p111, %p112
      %s114 = ssub.s32 %s17, %s24
      %p115 = scmp.eq.s32.totalorder %s114, 0
      %s117 = sadd.s32 %s116, 1
      %s118 = scalar_select %p115, %s116, %s117
      %p121 = pneg %p115
      %p122 = scmp.eq.s32.totalorder %s17, 7
      %p123 = por %p121, %p122
      %p124 = scmp.ne.s32.totalorder %s116, %s119
      %p125 = scmp.eq.s32.totalorder %s17, 0
      %p126 = por %p124, %p125
      %p127 = scmp.ne.s32.totalorder %s116, %s119
      %p128 = scmp.eq.s32.totalorder %s22, 7
      %p129 = por %p127, %p128
      %p130 = scmp.ne.s32.totalorder %s119, %s120
      %p131 = scmp.eq.s32.totalorder %s22, 0
      %p132 = por %p130, %p131
      %p133 = scmp.ne.s32.totalorder %s119, %s120
      %p134 = scmp.eq.s32.totalorder %s23, 7
      %p135 = por %p133, %p134
      %p137 = scmp.ne.s32.totalorder %s120, %s136
      %p138 = scmp.eq.s32.totalorder %s23, 0
      %p139 = por %p137, %p138
      %p140 = scmp.le.s32.totalorder 1, %s17
      %p141 = scmp.lt.s32.totalorder %s17, 9
      %p142 = pnand %p140, %p141
      %p143 = pneg %p142
      // Predicated region
      $region9: #{tpu_custom_call.1} parent=5 // pred_check
        _
      $region10: #{tpu_custom_call.1} parent=5 // pred_check_branch
        %145 = sbr.rel (%p142) target = $region12
      $region11: #{tpu_custom_call.1} parent=5 // pred_region
        %s146 = ssub.s32 %s17, 1
        // Predicated region
        $region13: #{tpu_custom_call.1} parent=11 // pred_check
          %p147 = pneg %p64
        $region14: #{tpu_custom_call.1} parent=11 // pred_check_branch
          %149 = sbr.rel (%p147) target = $region16
        $region15: #{tpu_custom_call.1} parent=11 // pred_region
          %s151 = ssub.s32 2048, 2048
          %152 = vsyncadd [#allocation7], %s151
          %s153 = sshll.u32 [#allocation6], 4
          %s154 = int_to_ptr.vmem [resolvable:$true] %s153
          %159 = dma.hbm_to_vmem [thread:$0]  %s1, 2048, %s154, [#allocation7], 128, 128, 8
        $region16: #{tpu_custom_call.1} parent=11 // pred_fallthru
          _
        // Predicated region
        $region17: #{tpu_custom_call.1} parent=11 // pred_check
          %p160 = pneg %p85
        $region18: #{tpu_custom_call.1} parent=11 // pred_check_branch
          %162 = sbr.rel (%p160) target = $region20
        $region19: #{tpu_custom_call.1} parent=11 // pred_region
          %s164 = ssub.s32 128, 128
          %165 = vsyncadd [#allocation7], %s164
          %s166 = sshll.u32 [#allocation8], 4
          %s167 = int_to_ptr.vmem [resolvable:$true] %s166
          %172 = dma.hbm_to_vmem [thread:$0]  %s2, 128, %s167, [#allocation7], 64, 64, 4
        $region20: #{tpu_custom_call.1} parent=11 // pred_fallthru
          _
        // Predicated region
        $region21: #{tpu_custom_call.1} parent=11 // pred_check
          %p173 = pneg %p106
        $region22: #{tpu_custom_call.1} parent=11 // pred_check_branch
          %175 = sbr.rel (%p173) target = $region24
        $region23: #{tpu_custom_call.1} parent=11 // pred_region
          _
        $region24: #{tpu_custom_call.1} parent=11 // pred_fallthru
          _
      $region12: #{tpu_custom_call.1} parent=5 // pred_fallthru
        _
      %p176 = scmp.lt.s32.totalorder %s17, 8
      // Predicated region
      $region25: #{tpu_custom_call.1} parent=5 // pred_check
        %p177 = pneg %p176
      $region26: #{tpu_custom_call.1} parent=5 // pred_check_branch
        %179 = sbr.rel (%p177) target = $region28
      $region27: #{tpu_custom_call.1} parent=5 // pred_region
        // Predicated region
        $region29: #{tpu_custom_call.1} parent=27 // pred_check
          %p180 = pneg %p37
        $region30: #{tpu_custom_call.1} parent=27 // pred_check_branch
          %182 = sbr.rel (%p180) target = $region32
        $region31: #{tpu_custom_call.1} parent=27 // pred_region
          %s183 = sand.u32 %s27, 1
          %s184 = scalar_lea.sflag [#allocation4], %s183
          %s185 = sand.u32 %s27, 1
          %s186 = smul.addr %s185, 64
          %s187 = scalar_lea.vmem [#allocation3], %s186
          %s188 = smul.u32 8, %s17
          %s190 = ssub.s32 1024, 1024
          %191 = vsyncadd %s184, %s190
          %s192 = smul.addr %s188, 128
          %s193 = scalar_lea.hbm %s0, %s192
          %s194 = sshll.u32 %s187, 4
          %s195 = int_to_ptr.vmem [resolvable:$true] %s194
          %200 = dma.hbm_to_vmem [thread:$0]  %s193, 1024, %s195, %s184, 128, 128, 8
        $region32: #{tpu_custom_call.1} parent=27 // pred_fallthru
          _
      $region28: #{tpu_custom_call.1} parent=5 // pred_fallthru
        _
      %p201 = scmp.le.s32.totalorder 1, %s17
      %p202 = scmp.lt.s32.totalorder %s17, 9
      %p203 = pnand %p201, %p202
      %p204 = pneg %p203
      // Predicated region
      $region33: #{tpu_custom_call.1} parent=5 // pred_check
        _
      $region34: #{tpu_custom_call.1} parent=5 // pred_check_branch
        %206 = sbr.rel (%p203) target = $region36
      $region35: #{tpu_custom_call.1} parent=5 // pred_region
        %s207 = ssub.s32 %s17, 1
        %s208 = sand.u32 %s30, 1
        %s209 = scalar_lea.sflag [#allocation4], %s208
        %s210 = sand.u32 %s30, 1
        %s211 = smul.addr %s210, 64
        %s212 = scalar_lea.vmem [#allocation3], %s211
        // Predicated region
        $region37: #{tpu_custom_call.1} parent=35 // pred_check
          %p213 = pneg %p43
        $region38: #{tpu_custom_call.1} parent=35 // pred_check_branch
          %215 = sbr.rel (%p213) target = $region40
        $region39: #{tpu_custom_call.1} parent=35 // pred_region
          %216 = dma.done %s209, 1024
        $region40: #{tpu_custom_call.1} parent=35 // pred_fallthru
          _
        // Predicated region
        $region41: #{tpu_custom_call.1} parent=35 // pred_check
          %p217 = pneg %p64
        $region42: #{tpu_custom_call.1} parent=35 // pred_check_branch
          %219 = sbr.rel (%p217) target = $region44
        $region43: #{tpu_custom_call.1} parent=35 // pred_region
          %220 = dma.done [#allocation7], 2048
        $region44: #{tpu_custom_call.1} parent=35 // pred_fallthru
          _
        // Predicated region
        $region45: #{tpu_custom_call.1} parent=35 // pred_check
          %p221 = pneg %p85
        $region46: #{tpu_custom_call.1} parent=35 // pred_check_branch
          %223 = sbr.rel (%p221) target = $region48
        $region47: #{tpu_custom_call.1} parent=35 // pred_region
          %224 = dma.done [#allocation7], 128
        $region48: #{tpu_custom_call.1} parent=35 // pred_fallthru
          _
        %s225 = sand.u32 %s30, 1
        %s226 = scalar_lea.sflag [#allocation4], %s225
        %s227 = sand.u32 %s30, 1
        %s228 = smul.addr %s227, 64
        %s229 = scalar_lea.vmem [#allocation3], %s228
        %p230 = pneg %p43
        %p231 = pneg %p40
        %p232 = pneg %p64
        %p233 = pneg %p61
        %p234 = pneg %p85
        %p235 = pneg %p82
        %p236 = pneg %p106
        %p237 = pneg %p103
        %p238 = pneg %p132
        %p239 = pneg %p129
        %s240 = sand.u32 %s119, 1
        %s241 = scalar_lea.sflag [#allocation5], %s240
        %s242 = sand.u32 %s119, 1
        %s243 = smul.addr %s242, 64
        %s244 = scalar_lea.vmem [#allocation9], %s243
        %s245 = smul.u32 8, %s22
        %s246 = smul.u32 8, %s22
        %v247 = vld [vmem:[%s212] sm:$0xff]
        %v248 = vld [vmem:[%s212 + $0x8] sm:$0xff]
        %v249 = vld [vmem:[%s212 + $0x10] sm:$0xff]
        %v250 = vld [vmem:[%s212 + $0x18] sm:$0xff]
        %v251 = vld [vmem:[%s212 + $0x20] sm:$0xff]
        %v252 = vld [vmem:[%s212 + $0x28] sm:$0xff]
        %v253 = vld [vmem:[%s212 + $0x30] sm:$0xff]
        %v254 = vld [vmem:[%s212 + $0x38] sm:$0xff]
        %v255 = vld [vmem:[#allocation6] sm:$0xff]
        %v256 = vld [vmem:[#allocation6 + $0x8] sm:$0xff]
        %v257 = vld [vmem:[#allocation6 + $0x10] sm:$0xff]
        %v258 = vld [vmem:[#allocation6 + $0x18] sm:$0xff]
        %v259 = vld [vmem:[#allocation6 + $0x20] sm:$0xff]
        %v260 = vld [vmem:[#allocation6 + $0x28] sm:$0xff]
        %v261 = vld [vmem:[#allocation6 + $0x30] sm:$0xff]
        %v262 = vld [vmem:[#allocation6 + $0x38] sm:$0xff]
        %v263 = vld [vmem:[#allocation6 + $0x40] sm:$0xff]
        %v264 = vld [vmem:[#allocation6 + $0x48] sm:$0xff]
        %v265 = vld [vmem:[#allocation6 + $0x50] sm:$0xff]
        %v266 = vld [vmem:[#allocation6 + $0x58] sm:$0xff]
        %v267 = vld [vmem:[#allocation6 + $0x60] sm:$0xff]
        %v268 = vld [vmem:[#allocation6 + $0x68] sm:$0xff]
        %v269 = vld [vmem:[#allocation6 + $0x70] sm:$0xff]
        %v270 = vld [vmem:[#allocation6 + $0x78] sm:$0xff]
        %271 = vmatprep.subr.mxu0 0.0
        %272 = vmatpush1.msra.mxu0 %v255
        %273 = vmatprep.subr.mxu0 0.0
        %274 = vmatpush1.msra.mxu0 %v256
        %275 = vmatprep.subr.mxu0 0.0
        %276 = vmatpush1.msra.mxu0 %v257
        %277 = vmatprep.subr.mxu0 0.0
        %278 = vmatpush1.msra.mxu0 %v258
        %279 = vmatprep.subr.mxu0 0.0
        %280 = vmatpush1.msra.mxu0 %v259
        %281 = vmatprep.subr.mxu0 0.0
        %282 = vmatpush1.msra.mxu0 %v260
        %283 = vmatprep.subr.mxu0 0.0
        %284 = vmatpush1.msra.mxu0 %v261
        %285 = vmatprep.subr.mxu0 0.0
        %286 = vmatpush1.msra.mxu0 %v262
        %287 = vmatprep.subr.mxu0 0.0
        %288 = vmatpush1.msra.mxu0 %v263
        %289 = vmatprep.subr.mxu0 0.0
        %290 = vmatpush1.msra.mxu0 %v264
        %291 = vmatprep.subr.mxu0 0.0
        %292 = vmatpush1.msra.mxu0 %v265
        %293 = vmatprep.subr.mxu0 0.0
        %294 = vmatpush1.msra.mxu0 %v266
        %295 = vmatprep.subr.mxu0 0.0
        %296 = vmatpush1.msra.mxu0 %v267
        %297 = vmatprep.subr.mxu0 0.0
        %298 = vmatpush1.msra.mxu0 %v268
        %299 = vmatprep.subr.mxu0 0.0
        %300 = vmatpush1.msra.mxu0 %v269
        %301 = vmatprep.subr.mxu0 0.0
        %302 = vmatpush1.msra.mxu0 %v270
        %303 = vmatprep.subr.mxu0 0.0
        %304 = vmatpush1.msra.mxu0 0.0
        %305 = vmatprep.subr.mxu0 0.0
        %306 = vmatpush1.msra.mxu0 0.0
        %307 = vmatprep.subr.mxu0 0.0
        %308 = vmatpush1.msra.mxu0 0.0
        %309 = vmatprep.subr.mxu0 0.0
        %310 = vmatpush1.msra.mxu0 0.0
        %311 = vmatprep.subr.mxu0 0.0
        %312 = vmatpush1.msra.mxu0 0.0
        %313 = vmatprep.subr.mxu0 0.0
        %314 = vmatpush1.msra.mxu0 0.0
        %315 = vmatprep.subr.mxu0 0.0
        %316 = vmatpush1.msra.mxu0 0.0
        %317 = vmatprep.subr.mxu0 0.0
        %318 = vmatpush1.msra.mxu0 0.0
        %319 = vmatprep.subr.mxu0 0.0
        %320 = vmatpush1.msra.mxu0 0.0
        %321 = vmatprep.subr.mxu0 0.0
        %322 = vmatpush1.msra.mxu0 0.0
        %323 = vmatprep.subr.mxu0 0.0
        %324 = vmatpush1.msra.mxu0 0.0
        %325 = vmatprep.subr.mxu0 0.0
        %326 = vmatpush1.msra.mxu0 0.0
        %327 = vmatprep.subr.mxu0 0.0
        %328 = vmatpush1.msra.mxu0 0.0
        %329 = vmatprep.subr.mxu0 0.0
        %330 = vmatpush1.msra.mxu0 0.0
        %331 = vmatprep.subr.mxu0 0.0
        %332 = vmatpush1.msra.mxu0 0.0
        %333 = vmatprep.subr.mxu0 0.0
        %334 = vmatpush1.msra.mxu0 0.0
        %335 = vmatprep.mubr.f32.mxu0 0.0
        %336 = vmatmul.mubr.f32.gmra.mrb[0].mxu0 %v247
        %v337 = vpop.f32.mrb[0].mxu0
        %v338 = vadd.f32 0.0, %v337
        %v339 = vpop.f32.mrb[0].mxu0
        %340 = vmatprep.mubr.f32.mxu0 0.0
        %341 = vmatmul.mubr.f32.gmra.mrb[0].mxu0 %v248
        %v342 = vpop.f32.mrb[0].mxu0
        %v343 = vadd.f32 0.0, %v342
        %v344 = vpop.f32.mrb[0].mxu0
        %345 = vmatprep.mubr.f32.mxu0 0.0
        %346 = vmatmul.mubr.f32.gmra.mrb[0].mxu0 %v249
        %v347 = vpop.f32.mrb[0].mxu0
        %v348 = vadd.f32 0.0, %v347
        %v349 = vpop.f32.mrb[0].mxu0
        %350 = vmatprep.mubr.f32.mxu0 0.0
        %351 = vmatmul.mubr.f32.gmra.mrb[0].mxu0 %v250
        %v352 = vpop.f32.mrb[0].mxu0
        %v353 = vadd.f32 0.0, %v352
        %v354 = vpop.f32.mrb[0].mxu0
        %355 = vmatprep.mubr.f32.mxu0 0.0
        %356 = vmatmul.mubr.f32.gmra.mrb[0].mxu0 %v251
        %v357 = vpop.f32.mrb[0].mxu0
        %v358 = vadd.f32 0.0, %v357
        %v359 = vpop.f32.mrb[0].mxu0
        %360 = vmatprep.mubr.f32.mxu0 0.0
        %361 = vmatmul.mubr.f32.gmra.mrb[0].mxu0 %v252
        %v362 = vpop.f32.mrb[0].mxu0
        %v363 = vadd.f32 0.0, %v362
        %v364 = vpop.f32.mrb[0].mxu0
        %365 = vmatprep.mubr.f32.mxu0 0.0
        %366 = vmatmul.mubr.f32.gmra.mrb[0].mxu0 %v253
        %v367 = vpop.f32.mrb[0].mxu0
        %v368 = vadd.f32 0.0, %v367
        %v369 = vpop.f32.mrb[0].mxu0
        %370 = vmatprep.mubr.f32.mxu0 0.0
        %371 = vmatmul.mubr.f32.gmra.mrb[0].mxu0 %v254
        %v372 = vpop.f32.mrb[0].mxu0
        %v373 = vadd.f32 0.0, %v372
        %v374 = vpop.f32.mrb[0].mxu0
        %375 = vdwg.mxu0
        %376 = vst [vmem:[#allocation2] sm:$0xff] %v338
        %377 = vst [vmem:[#allocation2 + $0x8] sm:$0xff] %v343
        %378 = vst [vmem:[#allocation2 + $0x10] sm:$0xff] %v348
        %379 = vst [vmem:[#allocation2 + $0x18] sm:$0xff] %v353
        %380 = vst [vmem:[#allocation2 + $0x20] sm:$0xff] %v358
        %381 = vst [vmem:[#allocation2 + $0x28] sm:$0xff] %v363
        %382 = vst [vmem:[#allocation2 + $0x30] sm:$0xff] %v368
        %383 = vst [vmem:[#allocation2 + $0x38] sm:$0xff] %v373
        %v384 = vld [vmem:[#allocation2] sm:$0xff]
        %v385 = vld [vmem:[#allocation2 + $0x8] sm:$0xff]
        %v386 = vld [vmem:[#allocation2 + $0x10] sm:$0xff]
        %v387 = vld [vmem:[#allocation2 + $0x18] sm:$0xff]
        %v388 = vld [vmem:[#allocation2 + $0x20] sm:$0xff]
        %v389 = vld [vmem:[#allocation2 + $0x28] sm:$0xff]
        %v390 = vld [vmem:[#allocation2 + $0x30] sm:$0xff]
        %v391 = vld [vmem:[#allocation2 + $0x38] sm:$0xff]
        %v392 = vld [vmem:[%s3] sm:$0x1]
        %v394 = vlaneseq
        %v395 = vshrl.u32 %v394, 7
        %v396 = vsub.s32 0, %v395
        %v397 = vrot.slane %v392, %v396
        %v399 = vadd.f32 %v384, %v397
        %v400 = vadd.f32 %v385, %v397
        %v401 = vadd.f32 %v386, %v397
        %v402 = vadd.f32 %v387, %v397
        %v403 = vadd.f32 %v388, %v397
        %v404 = vadd.f32 %v389, %v397
        %v405 = vadd.f32 %v390, %v397
        %v406 = vadd.f32 %v391, %v397
        %v407 = vmax.f32 %v399, 0.0
        %v408 = vmax.f32 %v400, 0.0
        %v409 = vmax.f32 %v401, 0.0
        %v410 = vmax.f32 %v402, 0.0
        %v411 = vmax.f32 %v403, 0.0
        %v412 = vmax.f32 %v404, 0.0
        %v413 = vmax.f32 %v405, 0.0
        %v414 = vmax.f32 %v406, 0.0
        %v415 = vld [vmem:[#allocation8] sm:$0xf]
        %vm416 = vcmask 31744
        %v418 = vsel %vm416, %v407, 0
        %v421 = vsel %vm416, %v408, 0
        %v424 = vsel %vm416, %v409, 0
        %v427 = vsel %vm416, %v410, 0
        %v430 = vsel %vm416, %v411, 0
        %v433 = vsel %vm416, %v412, 0
        %v436 = vsel %vm416, %v413, 0
        %v439 = vsel %vm416, %v414, 0
        %vm441 = vcmask 1043456
        %v443 = vsel %vm441, %v415, 0
        %445 = vmatprep.subr.mxu0 0.0
        %446 = vmatpush1.msra.mxu0 %v443
        %447 = vmatprep.subr.mxu0 0.0
        %448 = vmatpush1.msra.mxu0 0.0
        %449 = vmatprep.subr.mxu0 0.0
        %450 = vmatpush1.msra.mxu0 0.0
        %451 = vmatprep.subr.mxu0 0.0
        %452 = vmatpush1.msra.mxu0 0.0
        %453 = vmatprep.subr.mxu0 0.0
        %454 = vmatpush1.msra.mxu0 0.0
        %455 = vmatprep.subr.mxu0 0.0
        %456 = vmatpush1.msra.mxu0 0.0
        %457 = vmatprep.subr.mxu0 0.0
        %458 = vmatpush1.msra.mxu0 0.0
        %459 = vmatprep.subr.mxu0 0.0
        %460 = vmatpush1.msra.mxu0 0.0
        %461 = vmatprep.subr.mxu0 0.0
        %462 = vmatpush1.msra.mxu0 0.0
        %463 = vmatprep.subr.mxu0 0.0
        %464 = vmatpush1.msra.mxu0 0.0
        %465 = vmatprep.subr.mxu0 0.0
        %466 = vmatpush1.msra.mxu0 0.0
        %467 = vmatprep.subr.mxu0 0.0
        %468 = vmatpush1.msra.mxu0 0.0
        %469 = vmatprep.subr.mxu0 0.0
        %470 = vmatpush1.msra.mxu0 0.0
        %471 = vmatprep.subr.mxu0 0.0
        %472 = vmatpush1.msra.mxu0 0.0
        %473 = vmatprep.subr.mxu0 0.0
        %474 = vmatpush1.msra.mxu0 0.0
        %475 = vmatprep.subr.mxu0 0.0
        %476 = vmatpush1.msra.mxu0 0.0
        %477 = vmatprep.subr.mxu0 0.0
        %478 = vmatpush1.msra.mxu0 0.0
        %479 = vmatprep.subr.mxu0 0.0
        %480 = vmatpush1.msra.mxu0 0.0
        %481 = vmatprep.subr.mxu0 0.0
        %482 = vmatpush1.msra.mxu0 0.0
        %483 = vmatprep.subr.mxu0 0.0
        %484 = vmatpush1.msra.mxu0 0.0
        %485 = vmatprep.subr.mxu0 0.0
        %486 = vmatpush1.msra.mxu0 0.0
        %487 = vmatprep.subr.mxu0 0.0
        %488 = vmatpush1.msra.mxu0 0.0
        %489 = vmatprep.subr.mxu0 0.0
        %490 = vmatpush1.msra.mxu0 0.0
        %491 = vmatprep.subr.mxu0 0.0
        %492 = vmatpush1.msra.mxu0 0.0
        %493 = vmatprep.subr.mxu0 0.0
        %494 = vmatpush1.msra.mxu0 0.0
        %495 = vmatprep.subr.mxu0 0.0
        %496 = vmatpush1.msra.mxu0 0.0
        %497 = vmatprep.subr.mxu0 0.0
        %498 = vmatpush1.msra.mxu0 0.0
        %499 = vmatprep.subr.mxu0 0.0
        %500 = vmatpush1.msra.mxu0 0.0
        %501 = vmatprep.subr.mxu0 0.0
        %502 = vmatpush1.msra.mxu0 0.0
        %503 = vmatprep.subr.mxu0 0.0
        %504 = vmatpush1.msra.mxu0 0.0
        %505 = vmatprep.subr.mxu0 0.0
        %506 = vmatpush1.msra.mxu0 0.0
        %507 = vmatprep.subr.mxu0 0.0
        %508 = vmatpush1.msra.mxu0 0.0
        %509 = vmatprep.mubr.f32.mxu0 0.0
        %510 = vmatmul.mubr.f32.gmra.mrb[0].mxu0 %v418
        %v511 = vpop.f32.mrb[0].mxu0
        %v512 = vadd.f32 0.0, %v511
        %v513 = vpop.f32.mrb[0].mxu0
        %514 = vmatprep.mubr.f32.mxu0 0.0
        %515 = vmatmul.mubr.f32.gmra.mrb[0].mxu0 %v421
        %v516 = vpop.f32.mrb[0].mxu0
        %v517 = vadd.f32 0.0, %v516
        %v518 = vpop.f32.mrb[0].mxu0
        %519 = vmatprep.mubr.f32.mxu0 0.0
        %520 = vmatmul.mubr.f32.gmra.mrb[0].mxu0 %v424
        %v521 = vpop.f32.mrb[0].mxu0
        %v522 = vadd.f32 0.0, %v521
        %v523 = vpop.f32.mrb[0].mxu0
        %524 = vmatprep.mubr.f32.mxu0 0.0
        %525 = vmatmul.mubr.f32.gmra.mrb[0].mxu0 %v427
        %v526 = vpop.f32.mrb[0].mxu0
        %v527 = vadd.f32 0.0, %v526
        %v528 = vpop.f32.mrb[0].mxu0
        %529 = vmatprep.mubr.f32.mxu0 0.0
        %530 = vmatmul.mubr.f32.gmra.mrb[0].mxu0 %v430
        %v531 = vpop.f32.mrb[0].mxu0
        %v532 = vadd.f32 0.0, %v531
        %v533 = vpop.f32.mrb[0].mxu0
        %534 = vmatprep.mubr.f32.mxu0 0.0
        %535 = vmatmul.mubr.f32.gmra.mrb[0].mxu0 %v433
        %v536 = vpop.f32.mrb[0].mxu0
        %v537 = vadd.f32 0.0, %v536
        %v538 = vpop.f32.mrb[0].mxu0
        %539 = vmatprep.mubr.f32.mxu0 0.0
        %540 = vmatmul.mubr.f32.gmra.mrb[0].mxu0 %v436
        %v541 = vpop.f32.mrb[0].mxu0
        %v542 = vadd.f32 0.0, %v541
        %v543 = vpop.f32.mrb[0].mxu0
        %544 = vmatprep.mubr.f32.mxu0 0.0
        %545 = vmatmul.mubr.f32.gmra.mrb[0].mxu0 %v439
        %v546 = vpop.f32.mrb[0].mxu0
        %v547 = vadd.f32 0.0, %v546
        %v548 = vpop.f32.mrb[0].mxu0
        %549 = vdwg.mxu0
        %v550 = vadd.f32 %v384, %v512
        %v551 = vadd.f32 %v385, %v517
        %v552 = vadd.f32 %v386, %v522
        %v553 = vadd.f32 %v387, %v527
        %v554 = vadd.f32 %v388, %v532
        %v555 = vadd.f32 %v389, %v537
        %v556 = vadd.f32 %v390, %v542
        %v557 = vadd.f32 %v391, %v547
        %558 = vst [vmem:[#allocation2] sm:$0xff] %v550
        %559 = vst [vmem:[#allocation2 + $0x8] sm:$0xff] %v551
        %560 = vst [vmem:[#allocation2 + $0x10] sm:$0xff] %v552
        %561 = vst [vmem:[#allocation2 + $0x18] sm:$0xff] %v553
        %562 = vst [vmem:[#allocation2 + $0x20] sm:$0xff] %v554
        %563 = vst [vmem:[#allocation2 + $0x28] sm:$0xff] %v555
        %564 = vst [vmem:[#allocation2 + $0x30] sm:$0xff] %v556
        %565 = vst [vmem:[#allocation2 + $0x38] sm:$0xff] %v557
        %v566 = vld [vmem:[#allocation2] sm:$0xff]
        %v567 = vld [vmem:[#allocation2 + $0x8] sm:$0xff]
        %v568 = vld [vmem:[#allocation2 + $0x10] sm:$0xff]
        %v569 = vld [vmem:[#allocation2 + $0x18] sm:$0xff]
        %v570 = vld [vmem:[#allocation2 + $0x20] sm:$0xff]
        %v571 = vld [vmem:[#allocation2 + $0x28] sm:$0xff]
        %v572 = vld [vmem:[#allocation2 + $0x30] sm:$0xff]
        %v573 = vld [vmem:[#allocation2 + $0x38] sm:$0xff]
        %v574 = vld [vmem:[%s3] sm:$0x1]
        %v576 = vlaneseq
        %v577 = vshrl.u32 %v576, 7
        %v578 = vsub.s32 0, %v577
        %v579 = vrot.slane %v574, %v578
        %v581 = vadd.f32 %v566, %v579
        %v582 = vadd.f32 %v567, %v579
        %v583 = vadd.f32 %v568, %v579
        %v584 = vadd.f32 %v569, %v579
        %v585 = vadd.f32 %v570, %v579
        %v586 = vadd.f32 %v571, %v579
        %v587 = vadd.f32 %v572, %v579
        %v588 = vadd.f32 %v573, %v579
        %v589 = vmax.f32 %v581, 0.0
        %v590 = vmax.f32 %v582, 0.0
        %v591 = vmax.f32 %v583, 0.0
        %v592 = vmax.f32 %v584, 0.0
        %v593 = vmax.f32 %v585, 0.0
        %v594 = vmax.f32 %v586, 0.0
        %v595 = vmax.f32 %v587, 0.0
        %v596 = vmax.f32 %v588, 0.0
        %s597 = scalar_lea.vmem [#allocation8], 4
        %v598 = vld [vmem:[%s597] sm:$0xf]
        %607 = vrot.lane.b32.xlu0 %v589, 124
        %v608 = vpop.permute.xlu0 %607
        %609 = vrot.lane.b32.xlu0 %v590, 124
        %v610 = vpop.permute.xlu0 %609
        %611 = vrot.lane.b32.xlu0 %v591, 124
        %v612 = vpop.permute.xlu0 %611
        %613 = vrot.lane.b32.xlu0 %v592, 124
        %v614 = vpop.permute.xlu0 %613
        %615 = vrot.lane.b32.xlu0 %v593, 124
        %v616 = vpop.permute.xlu0 %615
        %617 = vrot.lane.b32.xlu0 %v594, 124
        %v618 = vpop.permute.xlu0 %617
        %619 = vrot.lane.b32.xlu0 %v595, 124
        %v620 = vpop.permute.xlu0 %619
        %621 = vrot.lane.b32.xlu0 %v596, 124
        %v622 = vpop.permute.xlu0 %621
        %v623 = vsel %vm416, %v608, 0
        %v625 = vsel %vm416, %v610, 0
        %v627 = vsel %vm416, %v612, 0
        %v629 = vsel %vm416, %v614, 0
        %v631 = vsel %vm416, %v616, 0
        %v633 = vsel %vm416, %v618, 0
        %v635 = vsel %vm416, %v620, 0
        %v637 = vsel %vm416, %v622, 0
        %v640 = vsel %vm441, %v598, 0
        %642 = vmatprep.subr.mxu0 0.0
        %643 = vmatpush1.msra.mxu0 %v640
        %644 = vmatprep.subr.mxu0 0.0
        %645 = vmatpush1.msra.mxu0 0.0
        %646 = vmatprep.subr.mxu0 0.0
        %647 = vmatpush1.msra.mxu0 0.0
        %648 = vmatprep.subr.mxu0 0.0
        %649 = vmatpush1.msra.mxu0 0.0
        %650 = vmatprep.subr.mxu0 0.0
        %651 = vmatpush1.msra.mxu0 0.0
        %652 = vmatprep.subr.mxu0 0.0
        %653 = vmatpush1.msra.mxu0 0.0
        %654 = vmatprep.subr.mxu0 0.0
        %655 = vmatpush1.msra.mxu0 0.0
        %656 = vmatprep.subr.mxu0 0.0
        %657 = vmatpush1.msra.mxu0 0.0
        %658 = vmatprep.subr.mxu0 0.0
        %659 = vmatpush1.msra.mxu0 0.0
        %660 = vmatprep.subr.mxu0 0.0
        %661 = vmatpush1.msra.mxu0 0.0
        %662 = vmatprep.subr.mxu0 0.0
        %663 = vmatpush1.msra.mxu0 0.0
        %664 = vmatprep.subr.mxu0 0.0
        %665 = vmatpush1.msra.mxu0 0.0
        %666 = vmatprep.subr.mxu0 0.0
        %667 = vmatpush1.msra.mxu0 0.0
        %668 = vmatprep.subr.mxu0 0.0
        %669 = vmatpush1.msra.mxu0 0.0
        %670 = vmatprep.subr.mxu0 0.0
        %671 = vmatpush1.msra.mxu0 0.0
        %672 = vmatprep.subr.mxu0 0.0
        %673 = vmatpush1.msra.mxu0 0.0
        %674 = vmatprep.subr.mxu0 0.0
        %675 = vmatpush1.msra.mxu0 0.0
        %676 = vmatprep.subr.mxu0 0.0
        %677 = vmatpush1.msra.mxu0 0.0
        %678 = vmatprep.subr.mxu0 0.0
        %679 = vmatpush1.msra.mxu0 0.0
        %680 = vmatprep.subr.mxu0 0.0
        %681 = vmatpush1.msra.mxu0 0.0
        %682 = vmatprep.subr.mxu0 0.0
        %683 = vmatpush1.msra.mxu0 0.0
        %684 = vmatprep.subr.mxu0 0.0
        %685 = vmatpush1.msra.mxu0 0.0
        %686 = vmatprep.subr.mxu0 0.0
        %687 = vmatpush1.msra.mxu0 0.0
        %688 = vmatprep.subr.mxu0 0.0
        %689 = vmatpush1.msra.mxu0 0.0
        %690 = vmatprep.subr.mxu0 0.0
        %691 = vmatpush1.msra.mxu0 0.0
        %692 = vmatprep.subr.mxu0 0.0
        %693 = vmatpush1.msra.mxu0 0.0
        %694 = vmatprep.subr.mxu0 0.0
        %695 = vmatpush1.msra.mxu0 0.0
        %696 = vmatprep.subr.mxu0 0.0
        %697 = vmatpush1.msra.mxu0 0.0
        %698 = vmatprep.subr.mxu0 0.0
        %699 = vmatpush1.msra.mxu0 0.0
        %700 = vmatprep.subr.mxu0 0.0
        %701 = vmatpush1.msra.mxu0 0.0
        %702 = vmatprep.subr.mxu0 0.0
        %703 = vmatpush1.msra.mxu0 0.0
        %704 = vmatprep.subr.mxu0 0.0
        %705 = vmatpush1.msra.mxu0 0.0
        %706 = vmatprep.mubr.f32.mxu0 0.0
        %707 = vmatmul.mubr.f32.gmra.mrb[0].mxu0 %v623
        %v708 = vpop.f32.mrb[0].mxu0
        %v709 = vadd.f32 0.0, %v708
        %v710 = vpop.f32.mrb[0].mxu0
        %711 = vmatprep.mubr.f32.mxu0 0.0
        %712 = vmatmul.mubr.f32.gmra.mrb[0].mxu0 %v625
        %v713 = vpop.f32.mrb[0].mxu0
        %v714 = vadd.f32 0.0, %v713
        %v715 = vpop.f32.mrb[0].mxu0
        %716 = vmatprep.mubr.f32.mxu0 0.0
        %717 = vmatmul.mubr.f32.gmra.mrb[0].mxu0 %v627
        %v718 = vpop.f32.mrb[0].mxu0
        %v719 = vadd.f32 0.0, %v718
        %v720 = vpop.f32.mrb[0].mxu0
        %721 = vmatprep.mubr.f32.mxu0 0.0
        %722 = vmatmul.mubr.f32.gmra.mrb[0].mxu0 %v629
        %v723 = vpop.f32.mrb[0].mxu0
        %v724 = vadd.f32 0.0, %v723
        %v725 = vpop.f32.mrb[0].mxu0
        %726 = vmatprep.mubr.f32.mxu0 0.0
        %727 = vmatmul.mubr.f32.gmra.mrb[0].mxu0 %v631
        %v728 = vpop.f32.mrb[0].mxu0
        %v729 = vadd.f32 0.0, %v728
        %v730 = vpop.f32.mrb[0].mxu0
        %731 = vmatprep.mubr.f32.mxu0 0.0
        %732 = vmatmul.mubr.f32.gmra.mrb[0].mxu0 %v633
        %v733 = vpop.f32.mrb[0].mxu0
        %v734 = vadd.f32 0.0, %v733
        %v735 = vpop.f32.mrb[0].mxu0
        %736 = vmatprep.mubr.f32.mxu0 0.0
        %737 = vmatmul.mubr.f32.gmra.mrb[0].mxu0 %v635
        %v738 = vpop.f32.mrb[0].mxu0
        %v739 = vadd.f32 0.0, %v738
        %v740 = vpop.f32.mrb[0].mxu0
        %741 = vmatprep.mubr.f32.mxu0 0.0
        %742 = vmatmul.mubr.f32.gmra.mrb[0].mxu0 %v637
        %v743 = vpop.f32.mrb[0].mxu0
        %v744 = vadd.f32 0.0, %v743
        %v745 = vpop.f32.mrb[0].mxu0
        %746 = vdwg.mxu0
        %v747 = vadd.f32 %v566, %v709
        %v748 = vadd.f32 %v567, %v714
        %v749 = vadd.f32 %v568, %v719
        %v750 = vadd.f32 %v569, %v724
        %v751 = vadd.f32 %v570, %v729
        %v752 = vadd.f32 %v571, %v734
        %v753 = vadd.f32 %v572, %v739
        %v754 = vadd.f32 %v573, %v744
        %755 = vst [vmem:[#allocation2] sm:$0xff] %v747
        %756 = vst [vmem:[#allocation2 + $0x8] sm:$0xff] %v748
        %757 = vst [vmem:[#allocation2 + $0x10] sm:$0xff] %v749
        %758 = vst [vmem:[#allocation2 + $0x18] sm:$0xff] %v750
        %759 = vst [vmem:[#allocation2 + $0x20] sm:$0xff] %v751
        %760 = vst [vmem:[#allocation2 + $0x28] sm:$0xff] %v752
        %761 = vst [vmem:[#allocation2 + $0x30] sm:$0xff] %v753
        %762 = vst [vmem:[#allocation2 + $0x38] sm:$0xff] %v754
        %v763 = vld [vmem:[%s212] sm:$0xff]
        %v764 = vld [vmem:[%s212 + $0x8] sm:$0xff]
        %v765 = vld [vmem:[%s212 + $0x10] sm:$0xff]
        %v766 = vld [vmem:[%s212 + $0x18] sm:$0xff]
        %v767 = vld [vmem:[%s212 + $0x20] sm:$0xff]
        %v768 = vld [vmem:[%s212 + $0x28] sm:$0xff]
        %v769 = vld [vmem:[%s212 + $0x30] sm:$0xff]
        %v770 = vld [vmem:[%s212 + $0x38] sm:$0xff]
        %771 = vst [vmem:[%s244] sm:$0xff] %v763
        %772 = vst [vmem:[%s244 + $0x8] sm:$0xff] %v764
        %773 = vst [vmem:[%s244 + $0x10] sm:$0xff] %v765
        %774 = vst [vmem:[%s244 + $0x18] sm:$0xff] %v766
        %775 = vst [vmem:[%s244 + $0x20] sm:$0xff] %v767
        %776 = vst [vmem:[%s244 + $0x28] sm:$0xff] %v768
        %777 = vst [vmem:[%s244 + $0x30] sm:$0xff] %v769
        %778 = vst [vmem:[%s244 + $0x38] sm:$0xff] %v770
        %v779 = vld [vmem:[#allocation2] sm:$0xff]
        %v780 = vld [vmem:[#allocation2 + $0x8] sm:$0xff]
        %v781 = vld [vmem:[#allocation2 + $0x10] sm:$0xff]
        %v782 = vld [vmem:[#allocation2 + $0x18] sm:$0xff]
        %v783 = vld [vmem:[#allocation2 + $0x20] sm:$0xff]
        %v784 = vld [vmem:[#allocation2 + $0x28] sm:$0xff]
        %v785 = vld [vmem:[#allocation2 + $0x30] sm:$0xff]
        %v786 = vld [vmem:[#allocation2 + $0x38] sm:$0xff]
        %v787 = vld [vmem:[%s3] sm:$0x1]
        %v789 = vlaneseq
        %v790 = vshrl.u32 %v789, 7
        %v791 = vsub.s32 0, %v790
        %v792 = vrot.slane %v787, %v791
        %v794 = vadd.f32 %v779, %v792
        %v795 = vadd.f32 %v780, %v792
        %v796 = vadd.f32 %v781, %v792
        %v797 = vadd.f32 %v782, %v792
        %v798 = vadd.f32 %v783, %v792
        %v799 = vadd.f32 %v784, %v792
        %v800 = vadd.f32 %v785, %v792
        %v801 = vadd.f32 %v786, %v792
        %v802 = vmax.f32 %v794, 0.0
        %v803 = vmax.f32 %v795, 0.0
        %v804 = vmax.f32 %v796, 0.0
        %v805 = vmax.f32 %v797, 0.0
        %v806 = vmax.f32 %v798, 0.0
        %v807 = vmax.f32 %v799, 0.0
        %v808 = vmax.f32 %v800, 0.0
        %v809 = vmax.f32 %v801, 0.0
        %818 = vrot.lane.b32.xlu0 %v802, 4
        %v819 = vpop.permute.xlu0 %818
        %820 = vrot.lane.b32.xlu0 %v803, 4
        %v821 = vpop.permute.xlu0 %820
        %822 = vrot.lane.b32.xlu0 %v804, 4
        %v823 = vpop.permute.xlu0 %822
        %824 = vrot.lane.b32.xlu0 %v805, 4
        %v825 = vpop.permute.xlu0 %824
        %826 = vrot.lane.b32.xlu0 %v806, 4
        %v827 = vpop.permute.xlu0 %826
        %828 = vrot.lane.b32.xlu0 %v807, 4
        %v829 = vpop.permute.xlu0 %828
        %830 = vrot.lane.b32.xlu0 %v808, 4
        %v831 = vpop.permute.xlu0 %830
        %832 = vrot.lane.b32.xlu0 %v809, 4
        %v833 = vpop.permute.xlu0 %832
        %vm842 = vcmask 130080
        %843 = vst.msk [vmem:[%s244] sm:$0xff] %vm842, %v819
        %844 = vst.msk [vmem:[%s244 + $0x8] sm:$0xff] %vm842, %v821
        %845 = vst.msk [vmem:[%s244 + $0x10] sm:$0xff] %vm842, %v823
        %846 = vst.msk [vmem:[%s244 + $0x18] sm:$0xff] %vm842, %v825
        %847 = vst.msk [vmem:[%s244 + $0x20] sm:$0xff] %vm842, %v827
        %848 = vst.msk [vmem:[%s244 + $0x28] sm:$0xff] %vm842, %v829
        %849 = vst.msk [vmem:[%s244 + $0x30] sm:$0xff] %vm842, %v831
        %850 = vst.msk [vmem:[%s244 + $0x38] sm:$0xff] %vm842, %v833
        %s851 = sand.u32 %s119, 1
        %s852 = scalar_lea.sflag [#allocation5], %s851
        %s853 = sand.u32 %s119, 1
        %s854 = smul.addr %s853, 64
        %s855 = scalar_lea.vmem [#allocation9], %s854
        // Predicated region
        $region49: #{tpu_custom_call.1} parent=35 // pred_check
          %p856 = pneg %p129
        $region50: #{tpu_custom_call.1} parent=35 // pred_check_branch
          %858 = sbr.rel (%p856) target = $region52
        $region51: #{tpu_custom_call.1} parent=35 // pred_region
          %s859 = smul.u32 8, %s22
          %s861 = ssub.s32 1024, 1024
          %862 = vsyncadd %s852, %s861
          %s863 = smul.addr %s859, 128
          %s864 = scalar_lea.hbm %s4, %s863
          %s865 = sshll.u32 %s855, 4
          %s866 = int_to_ptr.vmem [resolvable:$true] %s865
          %871 = dma.vmem_to_hbm [thread:$0]  %s866, 1024, %s864, %s852, 128, 128, 8
        $region52: #{tpu_custom_call.1} parent=35 // pred_fallthru
          _
      $region36: #{tpu_custom_call.1} parent=5 // pred_fallthru
        _
      %p872 = scmp.le.s32.totalorder 2, %s17
      // Predicated region
      $region53: #{tpu_custom_call.1} parent=5 // pred_check
        %p873 = pneg %p872
      $region54: #{tpu_custom_call.1} parent=5 // pred_check_branch
        %875 = sbr.rel (%p873) target = $region56
      $region55: #{tpu_custom_call.1} parent=5 // pred_region
        %s876 = ssub.s32 %s17, 2
        // Predicated region
        $region57: #{tpu_custom_call.1} parent=55 // pred_check
          %p877 = pneg %p135
        $region58: #{tpu_custom_call.1} parent=55 // pred_check_branch
          %879 = sbr.rel (%p877) target = $region60
        $region59: #{tpu_custom_call.1} parent=55 // pred_region
          %s880 = sand.u32 %s120, 1
          %s881 = scalar_lea.sflag [#allocation5], %s880
          %s882 = sand.u32 %s120, 1
          %s883 = smul.addr %s882, 64
          %s884 = scalar_lea.vmem [#allocation9], %s883
          %885 = dma.done %s881, 1024
        $region60: #{tpu_custom_call.1} parent=55 // pred_fallthru
          _
      $region56: #{tpu_custom_call.1} parent=5 // pred_fallthru
        _
    $region6: #{tpu_custom_call.1} parent=1 // loop_footer
      %s21 = sadd.s32 1, %s17
    $region7: #{tpu_custom_call.1} parent=1 // loop_footer_branch
      %16 = sbr.rel target = $region3
    $region8: #{tpu_custom_call.1} parent=1 // loop_exit
      _
    %886 = vsyncpa [#allocation4], 1
    %s887 = scalar_lea.sflag [#allocation4], 1
    %888 = vsyncpa %s887, 1
    %889 = vsyncpa [#allocation7], 1
    %890 = vsyncpa [#allocation5], 1
    %s891 = scalar_lea.sflag [#allocation5], 1
    %892 = vsyncpa %s891, 1

</llo_original>
